<compile_context>
chip_gen: v7x
topology: tpu7x:2x2x1
jax: 0.10.0
libtpu: 0.0.40
codegen_flags: <defaults>
</compile_context>

<pallas_src>
import functools

import jax
import jax.numpy as jnp
from jax.experimental import pallas as pl
from jax.experimental.pallas import tpu as pltpu


def _round_up(x, m):
    return ((x + m - 1) // m) * m


def _gated_cconv_kernel(x_ref, halo_ref, w_ref, b_ref, o_ref,
                        xwin_ref, acc_ref, *,
                        K, dilation, pad, tile_t, cout_p, xw_off):
    """One (batch, time-tile) grid step.

    x_ref:    (tile_t, Cin)          current time tile (NTC layout)
    halo_ref: (pad, Cin)             last `pad` rows of previous tile (zeros for tile 0)
    w_ref:    (K, Cin, 2*cout_p)     per-tap weights, both gates fused along lanes
    b_ref:    (1, 2*cout_p)          fused bias
    o_ref:    (tile_t, cout_p)       sigmoid(g1) * tanh(g2), lane-dense store
    xwin_ref: (xw_off+tile_t, Cin)   VMEM scratch window: [.. halo | current tile]
    acc_ref:  (tile_t, 2*cout_p)     f32 VMEM accumulator (both gates)
    """
    off0 = xw_off - pad
    # Assemble the causal window once per step; the taps below slice it.
    xwin_ref[off0:xw_off, :] = halo_ref[...]    # tiny unaligned halo store
    xwin_ref[xw_off:, :] = x_ref[...]           # 8-aligned bulk store

    # Bias broadcast hoisted out of the tap loop; accumulator starts at bias.
    bias = jnp.broadcast_to(b_ref[...], (tile_t, 2 * cout_p))

    for j in range(K):                          # static unrolled tap loop
        s = off0 + dilation * j
        # TODO(synk): per-tap sublane-unaligned slice; pltpu.roll / im2col could
        #             remove the small relayout copies.
        xs = xwin_ref[s:s + tile_t, :]                          # (tile_t, Cin)
        p = jnp.dot(xs, w_ref[j], preferred_element_type=jnp.float32)
        if j == 0:
            acc_ref[...] = bias + p
        else:
            acc_ref[...] += p

    acc = acc_ref[...]
    g1 = acc[:, :cout_p]        # lane-aligned split (multiple of 128)
    g2 = acc[:, cout_p:]
    o_ref[...] = (jax.nn.sigmoid(g1) * jnp.tanh(g2)).astype(o_ref.dtype)


def _pick_tile_t(T, Cin, cout_p, pad, K, vmem_budget_bytes=8 << 20):
    """Time-tile size from a per-step VMEM budget (v7x-safe)."""
    # Resident constants (weights + bias, roughly double-buffered once).
    fixed = 2 * 4 * (K * Cin * 2 * cout_p + 2 * cout_p)
    budget = max(vmem_budget_bytes - fixed, 1 << 20)
    # f32 bytes resident per time-row per step:
    #   input tile (2x buffers) + window scratch + out tile (2x) + accumulator
    per_row = 4 * (3 * Cin + 4 * cout_p)
    tile = max(int(budget // max(per_row, 1)), 8)
    tile = min(tile, 1024)                  # pipelining sweet spot / v7x safety
    tile = min(tile, _round_up(T, 8))       # never bigger than the sequence
    tile = max(tile, _round_up(pad, 8))     # halo must fit inside one tile
    return _round_up(tile, 8)


def gated_cconv1d(x_nct, weight, bias, *, kernel_size, dilation=1,
                  mask_self=True, conds=()):
    """x_nct: (N, Cin, T) f32.  weight: (2*Cout, Cin, K).  bias: (2*Cout,)."""
    assert len(conds) == 0, "only cond_channels=() supported"  # TODO(synk)
    N, Cin, T = x_nct.shape
    cout2, cin_w, K = weight.shape
    assert cin_w == Cin and K == kernel_size
    Cout = cout2 // 2
    pad = dilation * (kernel_size - 1) + int(mask_self)
    # TODO(synk): pad == 0 (kernel_size==1, mask_self=False) degenerate 1x1 case
    #             not wired up (no halo needed there).
    assert pad >= 1

    cout_p = _round_up(Cout, 128)           # lane-dense output store
    tile_t = _pick_tile_t(T, Cin, cout_p, pad, K)
    T_r = _round_up(T, tile_t)
    nT = T_r // tile_t
    xw_off = _round_up(pad, 8)              # 8-aligned offset of the main tile

    # NCT -> NTC; right-pad time to a tile multiple (zeros; causal conv =>
    # never read by valid outputs).  The causal *left* pad is NOT materialized.
    x_ntc = jnp.transpose(x_nct, (0, 2, 1)).astype(jnp.float32)   # (N, T, Cin)
    if T_r != T:
        x_ntc = jnp.pad(x_ntc, ((0, 0), (0, T_r - T), (0, 0)))

    # Per-tile halo: last `pad` rows of the previous tile (zeros for tile 0).
    x_tiles = x_ntc.reshape(N, nT, tile_t, Cin)
    halos = jnp.concatenate(
        [jnp.zeros((N, 1, pad, Cin), jnp.float32),
         x_tiles[:, :-1, tile_t - pad:, :]], axis=1)              # (N,nT,pad,Cin)

    # Fuse both gates along the out-channel (lane) dim, transpose to per-tap
    # (K, Cin, 2*cout_p) matmul form, zero-pad each gate's Cout to 128-multiple.
    w = weight.astype(jnp.float32)
    b = bias.astype(jnp.float32)

    def prep_w(wg):                          # (Cout, Cin, K) -> (K, Cin, cout_p)
        wt = jnp.transpose(wg, (2, 1, 0))
        return jnp.pad(wt, ((0, 0), (0, 0), (0, cout_p - Cout)))

    w_fused = jnp.concatenate([prep_w(w[:Cout]), prep_w(w[Cout:])], axis=-1)
    b_fused = jnp.concatenate(
        [jnp.pad(b[:Cout], (0, cout_p - Cout)),
         jnp.pad(b[Cout:], (0, cout_p - Cout))]).reshape(1, 2 * cout_p)

    kernel = functools.partial(
        _gated_cconv_kernel, K=K, dilation=dilation, pad=pad,
        tile_t=tile_t, cout_p=cout_p, xw_off=xw_off)

    cost = pl.CostEstimate(
        flops=2 * N * T_r * K * Cin * (2 * cout_p),
        transcendentals=2 * N * T_r * cout_p,
        bytes_accessed=4 * (x_ntc.size + halos.size + w_fused.size
                            + b_fused.size + N * T_r * cout_p))

    out_full = pl.pallas_call(
        kernel,
        out_shape=jax.ShapeDtypeStruct((N, T_r, cout_p), jnp.float32),
        grid_spec=pltpu.PrefetchScalarGridSpec(
            num_scalar_prefetch=0,
            grid=(N, nT),
            in_specs=[
                pl.BlockSpec((None, tile_t, Cin), lambda n, i: (n, i, 0)),
                pl.BlockSpec((None, None, pad, Cin), lambda n, i: (n, i, 0, 0)),
                pl.BlockSpec((K, Cin, 2 * cout_p), lambda n, i: (0, 0, 0)),
                pl.BlockSpec((1, 2 * cout_p), lambda n, i: (0, 0)),
            ],
            out_specs=pl.BlockSpec((None, tile_t, cout_p), lambda n, i: (n, i, 0)),
            scratch_shapes=[
                pltpu.VMEM((xw_off + tile_t, Cin), jnp.float32),     # window
                pltpu.VMEM((tile_t, 2 * cout_p), jnp.float32),       # fused acc
            ]),
        compiler_params=pltpu.CompilerParams(
            dimension_semantics=("parallel", "parallel")),
        cost_estimate=cost,
    )(x_ntc, halos, w_fused, b_fused)

    # Drop lane/time padding; NTC -> NCT to match the PyTorch output convention.
    return jnp.transpose(out_full[:, :T, :Cout], (0, 2, 1))


def _reference(x_nct, weight, bias, *, kernel_size, dilation, mask_self=True):
    """Pure-JAX reference mirroring the PyTorch forward (NCT layout)."""
    pad = dilation * (kernel_size - 1) + int(mask_self)
    xp = jnp.pad(x_nct, ((0, 0), (0, 0), (pad, 0)))
    out = jax.lax.conv_general_dilated(
        xp, weight, window_strides=(1,), padding=((0, 0),),
        rhs_dilation=(dilation,),
        dimension_numbers=("NCH", "OIH", "NCH"))
    out = out + bias[None, :, None]
    if mask_self:
        out = out[:, :, :-1]
    Cout = weight.shape[0] // 2
    g1, g2 = out[:, :Cout, :], out[:, Cout:, :]
    return jax.nn.sigmoid(g1) * jnp.tanh(g2)


if __name__ == "__main__":
    # Small shapes consistent with the module's forward: x is N x C x T.
    N, Cin, T = 2, 4, 16
    out_channels = 4
    kernel_size = 3
    dilation = 2

    key = jax.random.PRNGKey(0)
    kx, kw, kb = jax.random.split(key, 3)
    x = jax.random.normal(kx, (N, Cin, T), dtype=jnp.float32)
    # nn.Conv1d weight shape: (out_channels*2, in_channels/groups, kernel_size)
    weight = (jax.random.normal(kw, (2 * out_channels, Cin, kernel_size),
                                dtype=jnp.float32) * 0.3)
    bias = jax.random.normal(kb, (2 * out_channels,), dtype=jnp.float32) * 0.1

    out = gated_cconv1d(x, weight, bias, kernel_size=kernel_size,
                        dilation=dilation, mask_self=True, conds=())
    out = jax.block_until_ready(out)

    ref = _reference(x, weight, bias, kernel_size=kernel_size,
                     dilation=dilation, mask_self=True)
    assert out.shape == (N, out_channels, T)
    assert jnp.allclose(out, ref, atol=3e-5, rtol=3e-5), (
        float(jnp.max(jnp.abs(out - ref))))
    print("KERNEL_OK")
</pallas_src>

<mosaic_0001>
module attributes {stable_mosaic.version = 11 : i64} {
  func.func @_gated_cconv_kernel(%arg0: i32, %arg1: i32, %arg2: memref<1x16x4xf32, #tpu.memory_space<vmem>>, %arg3: memref<1x1x5x4xf32, #tpu.memory_space<vmem>>, %arg4: memref<3x4x256xf32, #tpu.memory_space<vmem>>, %arg5: memref<1x256xf32, #tpu.memory_space<vmem>>, %arg6: memref<1x16x128xf32, #tpu.memory_space<vmem>>, %arg7: memref<24x4xf32, #tpu.memory_space<vmem>>, %arg8: memref<16x256xf32, #tpu.memory_space<vmem>>) attributes {dimension_semantics = [#tpu.dimension_semantics<parallel>, #tpu.dimension_semantics<parallel>], iteration_bounds = array<i64: 2, 1>, scalar_prefetch = 0 : i64, scratch_operands = 2 : i64, tpu.core_type = #tpu.core_type<tc>, window_params = [{transform_indices = @transform_0, window_bounds = array<i64: 1, 16, 4>}, {transform_indices = @transform_1, window_bounds = array<i64: 1, 1, 5, 4>}, {pipeline_mode = #tpu.pipeline_mode<synchronous>, transform_indices = @transform_2, window_bounds = array<i64: 3, 4, 256>}, {pipeline_mode = #tpu.pipeline_mode<synchronous>, transform_indices = @transform_3, window_bounds = array<i64: 1, 256>}, {transform_indices = @transform_4, window_bounds = array<i64: 1, 16, 128>}]} {
    %c0 = arith.constant 0 : index
    %c0_0 = arith.constant 0 : index
    %c0_1 = arith.constant 0 : index
    %c0_2 = arith.constant 0 : index
    %0 = vector.load %arg3[%c0, %c0_0, %c0_1, %c0_2] : memref<1x1x5x4xf32, #tpu.memory_space<vmem>>, vector<1x1x5x4xf32>
    %1 = vector.shape_cast %0 : vector<1x1x5x4xf32> to vector<5x4xf32>
    %c3 = arith.constant 3 : index
    %c0_3 = arith.constant 0 : index
    %2 = vector.load %arg7[%c3, %c0_3] : memref<24x4xf32, #tpu.memory_space<vmem>>, vector<5x4xf32>
    tpu.vector_store %arg7[%c3, %c0_3], %1 {strides = array<i32>} : memref<24x4xf32, #tpu.memory_space<vmem>>, vector<5x4xf32>,
    %c0_4 = arith.constant 0 : index
    %c0_5 = arith.constant 0 : index
    %c0_6 = arith.constant 0 : index
    %3 = vector.load %arg2[%c0_4, %c0_5, %c0_6] : memref<1x16x4xf32, #tpu.memory_space<vmem>>, vector<1x16x4xf32>
    %4 = vector.shape_cast %3 : vector<1x16x4xf32> to vector<16x4xf32>
    %c8 = arith.constant 8 : index
    %c0_7 = arith.constant 0 : index
    %5 = vector.load %arg7[%c8, %c0_7] : memref<24x4xf32, #tpu.memory_space<vmem>>, vector<16x4xf32>
    tpu.vector_store %arg7[%c8, %c0_7], %4 {strides = array<i32>} : memref<24x4xf32, #tpu.memory_space<vmem>>, vector<16x4xf32>,
    %c0_8 = arith.constant 0 : index
    %c0_9 = arith.constant 0 : index
    %6 = vector.load %arg5[%c0_8, %c0_9] : memref<1x256xf32, #tpu.memory_space<vmem>>, vector<1x256xf32>
    %7 = vector.shape_cast %6 : vector<1x256xf32> to vector<1x256xf32>
    %8 = vector.broadcast %7 : vector<1x256xf32> to vector<16x256xf32>
    %c3_10 = arith.constant 3 : index
    %c0_11 = arith.constant 0 : index
    %9 = vector.load %arg7[%c3_10, %c0_11] : memref<24x4xf32, #tpu.memory_space<vmem>>, vector<16x4xf32>
    %c0_12 = arith.constant 0 : index
    %c0_13 = arith.constant 0 : index
    %c0_14 = arith.constant 0 : index
    %10 = vector.load %arg4[%c0_12, %c0_13, %c0_14] : memref<3x4x256xf32, #tpu.memory_space<vmem>>, vector<1x4x256xf32>
    %11 = vector.shape_cast %10 : vector<1x4x256xf32> to vector<4x256xf32>
    %cst = arith.constant dense<0.000000e+00> : vector<16x256xf32>
    %12 = tpu.matmul %9, %11, %cst {dimension_numbers = #tpu.dot_dimension_numbers<[1], [0], [0], [1], [0, 0, 1, 1], [], []>} : vector<16x4xf32>, vector<4x256xf32>, vector<16x256xf32> -> vector<16x256xf32>
    %13 = arith.addf %8, %12 : vector<16x256xf32>
    %c0_15 = arith.constant 0 : index
    %c0_16 = arith.constant 0 : index
    %14 = vector.load %arg8[%c0_15, %c0_16] : memref<16x256xf32, #tpu.memory_space<vmem>>, vector<16x256xf32>
    tpu.vector_store %arg8[%c0_15, %c0_16], %13 {strides = array<i32>} : memref<16x256xf32, #tpu.memory_space<vmem>>, vector<16x256xf32>,
    %c5 = arith.constant 5 : index
    %c0_17 = arith.constant 0 : index
    %15 = vector.load %arg7[%c5, %c0_17] : memref<24x4xf32, #tpu.memory_space<vmem>>, vector<16x4xf32>
    %c1 = arith.constant 1 : index
    %c0_18 = arith.constant 0 : index
    %c0_19 = arith.constant 0 : index
    %16 = vector.load %arg4[%c1, %c0_18, %c0_19] : memref<3x4x256xf32, #tpu.memory_space<vmem>>, vector<1x4x256xf32>
    %17 = vector.shape_cast %16 : vector<1x4x256xf32> to vector<4x256xf32>
    %cst_20 = arith.constant dense<0.000000e+00> : vector<16x256xf32>
    %18 = tpu.matmul %15, %17, %cst_20 {dimension_numbers = #tpu.dot_dimension_numbers<[1], [0], [0], [1], [0, 0, 1, 1], [], []>} : vector<16x4xf32>, vector<4x256xf32>, vector<16x256xf32> -> vector<16x256xf32>
    %c0_21 = arith.constant 0 : index
    %c0_22 = arith.constant 0 : index
    %19 = vector.load %arg8[%c0_21, %c0_22] : memref<16x256xf32, #tpu.memory_space<vmem>>, vector<16x256xf32>
    %20 = arith.addf %19, %18 : vector<16x256xf32>
    %c0_23 = arith.constant 0 : index
    %c0_24 = arith.constant 0 : index
    %21 = vector.load %arg8[%c0_23, %c0_24] : memref<16x256xf32, #tpu.memory_space<vmem>>, vector<16x256xf32>
    tpu.vector_store %arg8[%c0_23, %c0_24], %20 {strides = array<i32>} : memref<16x256xf32, #tpu.memory_space<vmem>>, vector<16x256xf32>,
    %c7 = arith.constant 7 : index
    %c0_25 = arith.constant 0 : index
    %22 = vector.load %arg7[%c7, %c0_25] : memref<24x4xf32, #tpu.memory_space<vmem>>, vector<16x4xf32>
    %c2 = arith.constant 2 : index
    %c0_26 = arith.constant 0 : index
    %c0_27 = arith.constant 0 : index
    %23 = vector.load %arg4[%c2, %c0_26, %c0_27] : memref<3x4x256xf32, #tpu.memory_space<vmem>>, vector<1x4x256xf32>
    %24 = vector.shape_cast %23 : vector<1x4x256xf32> to vector<4x256xf32>
    %cst_28 = arith.constant dense<0.000000e+00> : vector<16x256xf32>
    %25 = tpu.matmul %22, %24, %cst_28 {dimension_numbers = #tpu.dot_dimension_numbers<[1], [0], [0], [1], [0, 0, 1, 1], [], []>} : vector<16x4xf32>, vector<4x256xf32>, vector<16x256xf32> -> vector<16x256xf32>
    %c0_29 = arith.constant 0 : index
    %c0_30 = arith.constant 0 : index
    %26 = vector.load %arg8[%c0_29, %c0_30] : memref<16x256xf32, #tpu.memory_space<vmem>>, vector<16x256xf32>
    %27 = arith.addf %26, %25 : vector<16x256xf32>
    %c0_31 = arith.constant 0 : index
    %c0_32 = arith.constant 0 : index
    %28 = vector.load %arg8[%c0_31, %c0_32] : memref<16x256xf32, #tpu.memory_space<vmem>>, vector<16x256xf32>
    tpu.vector_store %arg8[%c0_31, %c0_32], %27 {strides = array<i32>} : memref<16x256xf32, #tpu.memory_space<vmem>>, vector<16x256xf32>,
    %c0_33 = arith.constant 0 : index
    %c0_34 = arith.constant 0 : index
    %29 = vector.load %arg8[%c0_33, %c0_34] : memref<16x256xf32, #tpu.memory_space<vmem>>, vector<16x256xf32>
    %30 = vector.extract_strided_slice %29 {offsets = [0, 0], sizes = [16, 128], strides = [1, 1]} : vector<16x256xf32> to vector<16x128xf32>
    %31 = vector.extract_strided_slice %29 {offsets = [0, 128], sizes = [16, 128], strides = [1, 1]} : vector<16x256xf32> to vector<16x128xf32>
    %32 = arith.negf %30 : vector<16x128xf32>
    %33 = math.exp %32 : vector<16x128xf32>
    %cst_35 = arith.constant 1.000000e+00 : f32
    %34 = vector.broadcast %cst_35 : f32 to vector<16x128xf32>
    %35 = arith.addf %34, %33 : vector<16x128xf32>
    %36 = arith.divf %34, %35 : vector<16x128xf32>
    %37 = math.tanh %31 : vector<16x128xf32>
    %38 = arith.mulf %36, %37 : vector<16x128xf32>
    %c0_36 = arith.constant 0 : index
    %c0_37 = arith.constant 0 : index
    %c0_38 = arith.constant 0 : index
    %39 = vector.load %arg6[%c0_36, %c0_37, %c0_38] : memref<1x16x128xf32, #tpu.memory_space<vmem>>, vector<1x16x128xf32>
    %40 = vector.shape_cast %39 : vector<1x16x128xf32> to vector<16x128xf32>
    %41 = vector.shape_cast %38 : vector<16x128xf32> to vector<1x16x128xf32>
    tpu.vector_store %arg6[%c0_36, %c0_37, %c0_38], %41 {strides = array<i32>} : memref<1x16x128xf32, #tpu.memory_space<vmem>>, vector<1x16x128xf32>,
    return
  }
  func.func @transform_0(%arg0: i32, %arg1: i32) -> (i32, i32, i32) {
    %c0_i32 = arith.constant 0 : i32
    %c0_i32_0 = arith.constant 0 : i32
    return %arg0, %arg1, %c0_i32 : i32, i32, i32
  }
  func.func @transform_1(%arg0: i32, %arg1: i32) -> (i32, i32, i32, i32) {
    %c0_i32 = arith.constant 0 : i32
    %c0_i32_0 = arith.constant 0 : i32
    %c0_i32_1 = arith.constant 0 : i32
    return %arg0, %arg1, %c0_i32, %c0_i32_0 : i32, i32, i32, i32
  }
  func.func @transform_2(%arg0: i32, %arg1: i32) -> (i32, i32, i32) {
    %c0_i32 = arith.constant 0 : i32
    %c0_i32_0 = arith.constant 0 : i32
    %c0_i32_1 = arith.constant 0 : i32
    %c0_i32_2 = arith.constant 0 : i32
    return %c0_i32, %c0_i32_0, %c0_i32_1 : i32, i32, i32
  }
  func.func @transform_3(%arg0: i32, %arg1: i32) -> (i32, i32) {
    %c0_i32 = arith.constant 0 : i32
    %c0_i32_0 = arith.constant 0 : i32
    %c0_i32_1 = arith.constant 0 : i32
    return %c0_i32, %c0_i32_0 : i32, i32
  }
  func.func @transform_4(%arg0: i32, %arg1: i32) -> (i32, i32, i32) {
    %c0_i32 = arith.constant 0 : i32
    %c0_i32_0 = arith.constant 0 : i32
    return %arg0, %arg1, %c0_i32 : i32, i32, i32
  }
}

</mosaic_0001>

<llo_original>
// kernel: tpu_custom_call.1
$region0: #{tpu_custom_call.1}
  #allocation0 [shape = 'u32[]', space=smem, size = 0x4, offset = 0x4, fixed_abs, tag = 'smem constant byte address 0x4 - core index']
  #allocation1 [shape = 'u32[144,128]{1,0:T(1,128)}', space=vmem, size = 0x12000, scoped, tag = 'internal scratch']
  #allocation2 [shape = 'f32[24,4]{1,0:T(8,128)}', space=vmem, size = 0x3000, scoped, tag = 'scratch operand']
  #allocation3 [shape = 'f32[16,256]{1,0:T(8,128)}', space=vmem, size = 0x4000, scoped, tag = 'scratch operand']
  %s0 = inlined_call_operand.vmem [shape: f32[2,16,4], index: 0, kind: input, shape index: {}]
  %s1 = inlined_call_operand.vmem [shape: f32[2,1,5,4], index: 1, kind: input, shape index: {}]
  %s2 = inlined_call_operand.vmem [shape: f32[3,4,256], index: 2, kind: input, shape index: {}]
  %s3 = inlined_call_operand.vmem [shape: f32[1,256], index: 3, kind: input, shape index: {}]
  %s4 = inlined_call_operand.hbm [shape: f32[2,16,128], index: 4, kind: output, shape index: {}]
  %s5 = sld [smem:[#allocation0]]
  $region49: #{tpu_custom_call.1} parent=0
    _
  %s7 = ssub.s32 1, %s5
  %s8 = scalar_select 0, %s7, %s5
  $region1: #{tpu_custom_call.1} parent=0
    #allocation4 [shape = 'u8[16384]{0}', space=vmem, size = 0x4000, scoped, tag = 'output window, operand 0']
    #allocation5 [shape = 's32[2]{0}', space=sflag, size = 0x8, scoped, tag = 'scoped memory for tpu_custom_call.1']
    %9 = vsyncpa [#allocation5], 0
    %s10 = scalar_lea.sflag [#allocation5], 1
    %11 = vsyncpa %s10, 0
    loop: start=0, step=1, limit=4
    $region2: #{tpu_custom_call.1} parent=1 // loop_pre_header
      _
    $region3: #{tpu_custom_call.1} parent=1 // loop_header
      %s13 = sphi 0, %s17
      %p14 = scmp.ge.s32.totalorder %s13, 4
      %s20 = sphi 0, %s32
      %s21 = sphi 0, %s28
      %s22 = sphi 0, %s20
      %s23 = sphi 0, %s21
      %s24 = sphi 0, %s22
      %s25 = sphi 0, %s23
      %s37 = sphi 0, %s39
      %s40 = sphi 0, %s37
      %s41 = sphi 0, %s40
      %s57 = sphi 0, %s41
      %s65 = sphi 0, %s67
      %s68 = sphi 0, %s65
      %s69 = sphi 0, %s68
      %s85 = sphi 0, %s69
      %s89 = sphi 0, %s89
      %s91 = sphi 0, %s89
      %s92 = sphi 0, %s91
      %s106 = sphi 0, %s92
      %s110 = sphi 0, %s110
      %s112 = sphi 0, %s110
      %s113 = sphi 0, %s112
      %s127 = sphi 0, %s113
      %s135 = sphi 0, %s137
      %s138 = sphi 0, %s135
      %s139 = sphi 0, %s138
      %s155 = sphi 0, %s139
    $region4: #{tpu_custom_call.1} parent=1 // loop_header_branch
      %16 = sbr.rel (%p14) target = $region8
    $region5: #{tpu_custom_call.1} parent=1 // loop_body
      %s18 = ssub.s32 %s13, 1
      %s19 = ssub.s32 %s13, 2
      %s26 = sadd.s32 1, %s21
      %p27 = scmp.ge.s32.totalorder %s26, 1
      %s28 = scalar_select %p27, 0, %s26
      %s29 = sadd.s32 1, %s20
      %s30 = scalar_select %p27, %s29, %s20
      %p31 = scmp.ge.s32.totalorder %s30, 2
      %s32 = scalar_select %p31, 0, %s30
      %s33 = ssub.s32 %s20, %s32
      %s34 = ssub.s32 %s21, %s28
      %s35 = sor.u32 %s33, %s34
      %p36 = scmp.eq.s32.totalorder %s35, 0
      %s38 = sadd.s32 %s37, 1
      %s39 = scalar_select %p36, %s37, %s38
      %p42 = pneg %p36
      %p43 = scmp.eq.s32.totalorder %s13, 1
      %p44 = por %p42, %p43
      %p45 = scmp.ne.s32.totalorder %s37, %s40
      %p46 = scmp.eq.s32.totalorder %s13, 0
      %p47 = por %p45, %p46
      %p48 = scmp.ne.s32.totalorder %s37, %s40
      %p49 = scmp.eq.s32.totalorder %s18, 1
      %p50 = por %p48, %p49
      %p51 = scmp.ne.s32.totalorder %s40, %s41
      %p52 = scmp.eq.s32.totalorder %s18, 0
      %p53 = por %p51, %p52
      %p54 = scmp.ne.s32.totalorder %s40, %s41
      %p55 = scmp.eq.s32.totalorder %s19, 1
      %p56 = por %p54, %p55
      %p58 = scmp.ne.s32.totalorder %s41, %s57
      %p59 = scmp.eq.s32.totalorder %s19, 0
      %p60 = por %p58, %p59
      %s61 = ssub.s32 %s20, %s32
      %s62 = ssub.s32 %s21, %s28
      %s63 = sor.u32 %s61, %s62
      %p64 = scmp.eq.s32.totalorder %s63, 0
      %s66 = sadd.s32 %s65, 1
      %s67 = scalar_select %p64, %s65, %s66
      %p70 = pneg %p64
      %p71 = scmp.eq.s32.totalorder %s13, 1
      %p72 = por %p70, %p71
      %p73 = scmp.ne.s32.totalorder %s65, %s68
      %p74 = scmp.eq.s32.totalorder %s13, 0
      %p75 = por %p73, %p74
      %p76 = scmp.ne.s32.totalorder %s65, %s68
      %p77 = scmp.eq.s32.totalorder %s18, 1
      %p78 = por %p76, %p77
      %p79 = scmp.ne.s32.totalorder %s68, %s69
      %p80 = scmp.eq.s32.totalorder %s18, 0
      %p81 = por %p79, %p80
      %p82 = scmp.ne.s32.totalorder %s68, %s69
      %p83 = scmp.eq.s32.totalorder %s19, 1
      %p84 = por %p82, %p83
      %p86 = scmp.ne.s32.totalorder %s69, %s85
      %p87 = scmp.eq.s32.totalorder %s19, 0
      %p88 = por %p86, %p87
      %s90 = sadd.s32 %s89, 1
      %p93 = scmp.eq.s32.totalorder %s13, 1
      %p94 = scmp.ne.s32.totalorder %s89, %s91
      %p95 = scmp.eq.s32.totalorder %s13, 0
      %p96 = por %p94, %p95
      %p97 = scmp.ne.s32.totalorder %s89, %s91
      %p98 = scmp.eq.s32.totalorder %s18, 1
      %p99 = por %p97, %p98
      %p100 = scmp.ne.s32.totalorder %s91, %s92
      %p101 = scmp.eq.s32.totalorder %s18, 0
      %p102 = por %p100, %p101
      %p103 = scmp.ne.s32.totalorder %s91, %s92
      %p104 = scmp.eq.s32.totalorder %s19, 1
      %p105 = por %p103, %p104
      %p107 = scmp.ne.s32.totalorder %s92, %s106
      %p108 = scmp.eq.s32.totalorder %s19, 0
      %p109 = por %p107, %p108
      %s111 = sadd.s32 %s110, 1
      %p114 = scmp.eq.s32.totalorder %s13, 1
      %p115 = scmp.ne.s32.totalorder %s110, %s112
      %p116 = scmp.eq.s32.totalorder %s13, 0
      %p117 = por %p115, %p116
      %p118 = scmp.ne.s32.totalorder %s110, %s112
      %p119 = scmp.eq.s32.totalorder %s18, 1
      %p120 = por %p118, %p119
      %p121 = scmp.ne.s32.totalorder %s112, %s113
      %p122 = scmp.eq.s32.totalorder %s18, 0
      %p123 = por %p121, %p122
      %p124 = scmp.ne.s32.totalorder %s112, %s113
      %p125 = scmp.eq.s32.totalorder %s19, 1
      %p126 = por %p124, %p125
      %p128 = scmp.ne.s32.totalorder %s113, %s127
      %p129 = scmp.eq.s32.totalorder %s19, 0
      %p130 = por %p128, %p129
      %s131 = ssub.s32 %s20, %s32
      %s132 = ssub.s32 %s21, %s28
      %s133 = sor.u32 %s131, %s132
      %p134 = scmp.eq.s32.totalorder %s133, 0
      %s136 = sadd.s32 %s135, 1
      %s137 = scalar_select %p134, %s135, %s136
      %p140 = pneg %p134
      %p141 = scmp.eq.s32.totalorder %s13, 1
      %p142 = por %p140, %p141
      %p143 = scmp.ne.s32.totalorder %s135, %s138
      %p144 = scmp.eq.s32.totalorder %s13, 0
      %p145 = por %p143, %p144
      %p146 = scmp.ne.s32.totalorder %s135, %s138
      %p147 = scmp.eq.s32.totalorder %s18, 1
      %p148 = por %p146, %p147
      %p149 = scmp.ne.s32.totalorder %s138, %s139
      %p150 = scmp.eq.s32.totalorder %s18, 0
      %p151 = por %p149, %p150
      %p152 = scmp.ne.s32.totalorder %s138, %s139
      %p153 = scmp.eq.s32.totalorder %s19, 1
      %p154 = por %p152, %p153
      %p156 = scmp.ne.s32.totalorder %s139, %s155
      %p157 = scmp.eq.s32.totalorder %s19, 0
      %p158 = por %p156, %p157
      %p159 = scmp.le.s32.totalorder 1, %s13
      %p160 = scmp.lt.s32.totalorder %s13, 3
      %p161 = pnand %p159, %p160
      %p162 = pneg %p161
      // Predicated region
      $region9: #{tpu_custom_call.1} parent=5 // pred_check
        _
      $region10: #{tpu_custom_call.1} parent=5 // pred_check_branch
        %164 = sbr.rel (%p161) target = $region12
      $region11: #{tpu_custom_call.1} parent=5 // pred_region
        %s165 = ssub.s32 %s13, 1
        // Predicated region
        $region13: #{tpu_custom_call.1} parent=11 // pred_check
          %p166 = pneg %p102
        $region14: #{tpu_custom_call.1} parent=11 // pred_check_branch
          %168 = sbr.rel (%p166) target = $region16
        $region15: #{tpu_custom_call.1} parent=11 // pred_region
          _
        $region16: #{tpu_custom_call.1} parent=11 // pred_fallthru
          _
        // Predicated region
        $region17: #{tpu_custom_call.1} parent=11 // pred_check
          %p169 = pneg %p123
        $region18: #{tpu_custom_call.1} parent=11 // pred_check_branch
          %171 = sbr.rel (%p169) target = $region20
        $region19: #{tpu_custom_call.1} parent=11 // pred_region
          _
        $region20: #{tpu_custom_call.1} parent=11 // pred_fallthru
          _
      $region12: #{tpu_custom_call.1} parent=5 // pred_fallthru
        _
      %p172 = scmp.lt.s32.totalorder %s13, 2
      // Predicated region
      $region21: #{tpu_custom_call.1} parent=5 // pred_check
        %p173 = pneg %p172
      $region22: #{tpu_custom_call.1} parent=5 // pred_check_branch
        %175 = sbr.rel (%p173) target = $region24
      $region23: #{tpu_custom_call.1} parent=5 // pred_region
        // Predicated region
        $region25: #{tpu_custom_call.1} parent=23 // pred_check
          %p176 = pneg %p47
        $region26: #{tpu_custom_call.1} parent=23 // pred_check_branch
          %178 = sbr.rel (%p176) target = $region28
        $region27: #{tpu_custom_call.1} parent=23 // pred_region
          %s179 = smul.u32 2, %s21
          %p180 = scmp.lt.s32.totalorder %s20, 1
          %s181 = scalar_select %p180, %s20, 1
          %p182 = scmp.lt.s32.totalorder %s179, 1
          %s183 = scalar_select %p182, %s179, 1
          %s184 = smul.addr %s181, 2
          %s185 = sadd.s32 %s183, %s184
          %s186 = smul.addr %s185, 8
          %s187 = scalar_lea.vmem %s0, %s186
          %s188 = smul.u32 2, %s21
        $region28: #{tpu_custom_call.1} parent=23 // pred_fallthru
          _
        // Predicated region
        $region29: #{tpu_custom_call.1} parent=23 // pred_check
          %p189 = pneg %p75
        $region30: #{tpu_custom_call.1} parent=23 // pred_check_branch
          %191 = sbr.rel (%p189) target = $region32
        $region31: #{tpu_custom_call.1} parent=23 // pred_region
          %p192 = scmp.lt.s32.totalorder %s20, 1
          %s193 = scalar_select %p192, %s20, 1
          %p194 = scmp.lt.s32.totalorder %s21, 0
          %s195 = scalar_select %p194, %s21, 0
          %s196 = sadd.s32 %s195, %s193
          %s197 = smul.addr %s196, 8
          %s198 = scalar_lea.vmem %s1, %s197
        $region32: #{tpu_custom_call.1} parent=23 // pred_fallthru
          _
      $region24: #{tpu_custom_call.1} parent=5 // pred_fallthru
        _
      %p199 = scmp.le.s32.totalorder 1, %s13
      %p200 = scmp.lt.s32.totalorder %s13, 3
      %p201 = pnand %p199, %p200
      %p202 = pneg %p201
      // Predicated region
      $region33: #{tpu_custom_call.1} parent=5 // pred_check
        _
      $region34: #{tpu_custom_call.1} parent=5 // pred_check_branch
        %204 = sbr.rel (%p201) target = $region36
      $region35: #{tpu_custom_call.1} parent=5 // pred_region
        %s205 = ssub.s32 %s13, 1
        %s206 = smul.u32 2, %s23
        %p207 = scmp.lt.s32.totalorder %s22, 1
        %s208 = scalar_select %p207, %s22, 1
        %p209 = scmp.lt.s32.totalorder %s206, 1
        %s210 = scalar_select %p209, %s206, 1
        %s211 = smul.addr %s208, 2
        %s212 = sadd.s32 %s210, %s211
        %s213 = smul.addr %s212, 8
        %s214 = scalar_lea.vmem %s0, %s213
        %p215 = pneg %p53
        %p216 = pneg %p50
        %p217 = scmp.lt.s32.totalorder %s22, 1
        %s218 = scalar_select %p217, %s22, 1
        %p219 = scmp.lt.s32.totalorder %s23, 0
        %s220 = scalar_select %p219, %s23, 0
        %s221 = sadd.s32 %s220, %s218
        %s222 = smul.addr %s221, 8
        %s223 = scalar_lea.vmem %s1, %s222
        %p224 = pneg %p81
        %p225 = pneg %p78
        %p226 = pneg %p102
        %p227 = pneg %p99
        %p228 = pneg %p123
        %p229 = pneg %p120
        %p230 = pneg %p151
        %p231 = pneg %p148
        %s232 = sand.u32 %s138, 1
        %s233 = scalar_lea.sflag [#allocation5], %s232
        %s234 = sand.u32 %s138, 1
        %s235 = smul.addr %s234, 16
        %s236 = scalar_lea.vmem [#allocation4], %s235
        %s237 = smul.u32 2, %s23
        %p238 = scmp.lt.s32.totalorder %s22, 1
        %s239 = scalar_select %p238, %s22, 1
        %p240 = scmp.lt.s32.totalorder %s237, 1
        %s241 = scalar_select %p240, %s237, 1
        %s242 = smul.addr %s239, 2
        %s243 = sadd.s32 %s241, %s242
        %s244 = smul.addr %s243, 8
        %s245 = scalar_lea.vmem %s0, %s244
        %s246 = smul.u32 2, %s23
        %p247 = scmp.lt.s32.totalorder %s22, 1
        %s248 = scalar_select %p247, %s22, 1
        %p249 = scmp.lt.s32.totalorder %s23, 0
        %s250 = scalar_select %p249, %s23, 0
        %s251 = sadd.s32 %s250, %s248
        %s252 = smul.addr %s251, 8
        %s253 = scalar_lea.vmem %s1, %s252
        %s254 = smul.u32 2, %s23
        %v255 = vld [vmem:[%s253] sm:$0x1f]
        %vm256 = vcmask 28672
        %257 = vst.msk [vmem:[#allocation2 + $0x3] sm:$0x1f] %vm256, %v255
        %v258 = vld [vmem:[%s245] sm:$0xff]
        %v259 = vld [vmem:[%s245 + $0x8] sm:$0xff]
        %vm260 = vcmask 31744
        %261 = vst.msk [vmem:[#allocation2 + $0x8] sm:$0xff] %vm260, %v258
        %262 = vst.msk [vmem:[#allocation2 + $0x10] sm:$0xff] %vm260, %v259
        %v263 = vld [vmem:[%s3] sm:$0x3]
        %v265 = vlaneseq
        %v266 = vshrl.u32 %v265, 7
        %v267 = vsub.s32 0, %v266
        %v268 = vrot.slane %v263, %v267
        %v269 = vlaneseq
        %v270 = vshrl.u32 %v269, 7
        %v271 = vsub.s32 1, %v270
        %v272 = vrot.slane %v263, %v271
        %v275 = vld [vmem:[#allocation2 + $0x3] sm:$0xff]
        %v276 = vld [vmem:[#allocation2 + $0xb] sm:$0xff]
        %v277 = vld [vmem:[%s2] sm:$0xff]
        %v279 = vcombine.high %v277, %v277
        %v281 = vsel %vm260, %v275, 0
        %v284 = vsel %vm260, %v276, 0
        %vm286 = vcmask 1043456
        %v287 = vsel %vm286, %v277, 0
        %v289 = vsel %vm286, %v279, 0
        %291 = vmatprep.subr.mxu0 %v289
        %292 = vmatpush1.msra.mxu0 %v287
        %293 = vmatprep.subr.mxu0 0.0
        %294 = vmatpush1.msra.mxu0 0.0
        %295 = vmatprep.subr.mxu0 0.0
        %296 = vmatpush1.msra.mxu0 0.0
        %297 = vmatprep.subr.mxu0 0.0
        %298 = vmatpush1.msra.mxu0 0.0
        %299 = vmatprep.subr.mxu0 0.0
        %300 = vmatpush1.msra.mxu0 0.0
        %301 = vmatprep.subr.mxu0 0.0
        %302 = vmatpush1.msra.mxu0 0.0
        %303 = vmatprep.subr.mxu0 0.0
        %304 = vmatpush1.msra.mxu0 0.0
        %305 = vmatprep.subr.mxu0 0.0
        %306 = vmatpush1.msra.mxu0 0.0
        %307 = vmatprep.subr.mxu0 0.0
        %308 = vmatpush1.msra.mxu0 0.0
        %309 = vmatprep.subr.mxu0 0.0
        %310 = vmatpush1.msra.mxu0 0.0
        %311 = vmatprep.subr.mxu0 0.0
        %312 = vmatpush1.msra.mxu0 0.0
        %313 = vmatprep.subr.mxu0 0.0
        %314 = vmatpush1.msra.mxu0 0.0
        %315 = vmatprep.subr.mxu0 0.0
        %316 = vmatpush1.msra.mxu0 0.0
        %317 = vmatprep.subr.mxu0 0.0
        %318 = vmatpush1.msra.mxu0 0.0
        %319 = vmatprep.subr.mxu0 0.0
        %320 = vmatpush1.msra.mxu0 0.0
        %321 = vmatprep.subr.mxu0 0.0
        %322 = vmatpush1.msra.mxu0 0.0
        %323 = vmatprep.subr.mxu0 0.0
        %324 = vmatpush1.msra.mxu0 0.0
        %325 = vmatprep.subr.mxu0 0.0
        %326 = vmatpush1.msra.mxu0 0.0
        %327 = vmatprep.subr.mxu0 0.0
        %328 = vmatpush1.msra.mxu0 0.0
        %329 = vmatprep.subr.mxu0 0.0
        %330 = vmatpush1.msra.mxu0 0.0
        %331 = vmatprep.subr.mxu0 0.0
        %332 = vmatpush1.msra.mxu0 0.0
        %333 = vmatprep.subr.mxu0 0.0
        %334 = vmatpush1.msra.mxu0 0.0
        %335 = vmatprep.subr.mxu0 0.0
        %336 = vmatpush1.msra.mxu0 0.0
        %337 = vmatprep.subr.mxu0 0.0
        %338 = vmatpush1.msra.mxu0 0.0
        %339 = vmatprep.subr.mxu0 0.0
        %340 = vmatpush1.msra.mxu0 0.0
        %341 = vmatprep.subr.mxu0 0.0
        %342 = vmatpush1.msra.mxu0 0.0
        %343 = vmatprep.subr.mxu0 0.0
        %344 = vmatpush1.msra.mxu0 0.0
        %345 = vmatprep.subr.mxu0 0.0
        %346 = vmatpush1.msra.mxu0 0.0
        %347 = vmatprep.subr.mxu0 0.0
        %348 = vmatpush1.msra.mxu0 0.0
        %349 = vmatprep.subr.mxu0 0.0
        %350 = vmatpush1.msra.mxu0 0.0
        %351 = vmatprep.subr.mxu0 0.0
        %352 = vmatpush1.msra.mxu0 0.0
        %353 = vmatprep.subr.mxu0 0.0
        %354 = vmatpush1.msra.mxu0 0.0
        %355 = vmatprep.mubr.f32.mxu0 0.0
        %356 = vmatmul.mubr.f32.gmra.mrb[0].mxu0 %v281
        %v357 = vpop.f32.mrb[0].mxu0
        %v358 = vadd.f32 0.0, %v357
        %v359 = vpop.f32.mrb[0].mxu0
        %v360 = vadd.f32 0.0, %v359
        %361 = vmatprep.mubr.f32.mxu0 0.0
        %362 = vmatmul.mubr.f32.gmra.mrb[0].mxu0 %v284
        %v363 = vpop.f32.mrb[0].mxu0
        %v364 = vadd.f32 0.0, %v363
        %v365 = vpop.f32.mrb[0].mxu0
        %v366 = vadd.f32 0.0, %v365
        %367 = vdwg.mxu0
        %v368 = vadd.f32 %v268, %v358
        %v369 = vadd.f32 %v272, %v360
        %v370 = vadd.f32 %v268, %v364
        %v371 = vadd.f32 %v272, %v366
        %372 = vst [vmem:[#allocation3] sm:$0xff] %v368
        %373 = vst [vmem:[#allocation3 + $0x8] sm:$0xff] %v369
        %374 = vst [vmem:[#allocation3 + $0x10] sm:$0xff] %v370
        %375 = vst [vmem:[#allocation3 + $0x18] sm:$0xff] %v371
        %v376 = vld [vmem:[#allocation2 + $0x5] sm:$0xff]
        %v377 = vld [vmem:[#allocation2 + $0xd] sm:$0xff]
        %s378 = scalar_lea.vmem %s2, 8
        %v379 = vld [vmem:[%s378] sm:$0xff]
        %v381 = vcombine.high %v379, %v379
        %v383 = vsel %vm260, %v376, 0
        %v386 = vsel %vm260, %v377, 0
        %v388 = vsel %vm286, %v379, 0
        %v390 = vsel %vm286, %v381, 0
        %392 = vmatprep.subr.mxu0 %v390
        %393 = vmatpush1.msra.mxu0 %v388
        %394 = vmatprep.subr.mxu0 0.0
        %395 = vmatpush1.msra.mxu0 0.0
        %396 = vmatprep.subr.mxu0 0.0
        %397 = vmatpush1.msra.mxu0 0.0
        %398 = vmatprep.subr.mxu0 0.0
        %399 = vmatpush1.msra.mxu0 0.0
        %400 = vmatprep.subr.mxu0 0.0
        %401 = vmatpush1.msra.mxu0 0.0
        %402 = vmatprep.subr.mxu0 0.0
        %403 = vmatpush1.msra.mxu0 0.0
        %404 = vmatprep.subr.mxu0 0.0
        %405 = vmatpush1.msra.mxu0 0.0
        %406 = vmatprep.subr.mxu0 0.0
        %407 = vmatpush1.msra.mxu0 0.0
        %408 = vmatprep.subr.mxu0 0.0
        %409 = vmatpush1.msra.mxu0 0.0
        %410 = vmatprep.subr.mxu0 0.0
        %411 = vmatpush1.msra.mxu0 0.0
        %412 = vmatprep.subr.mxu0 0.0
        %413 = vmatpush1.msra.mxu0 0.0
        %414 = vmatprep.subr.mxu0 0.0
        %415 = vmatpush1.msra.mxu0 0.0
        %416 = vmatprep.subr.mxu0 0.0
        %417 = vmatpush1.msra.mxu0 0.0
        %418 = vmatprep.subr.mxu0 0.0
        %419 = vmatpush1.msra.mxu0 0.0
        %420 = vmatprep.subr.mxu0 0.0
        %421 = vmatpush1.msra.mxu0 0.0
        %422 = vmatprep.subr.mxu0 0.0
        %423 = vmatpush1.msra.mxu0 0.0
        %424 = vmatprep.subr.mxu0 0.0
        %425 = vmatpush1.msra.mxu0 0.0
        %426 = vmatprep.subr.mxu0 0.0
        %427 = vmatpush1.msra.mxu0 0.0
        %428 = vmatprep.subr.mxu0 0.0
        %429 = vmatpush1.msra.mxu0 0.0
        %430 = vmatprep.subr.mxu0 0.0
        %431 = vmatpush1.msra.mxu0 0.0
        %432 = vmatprep.subr.mxu0 0.0
        %433 = vmatpush1.msra.mxu0 0.0
        %434 = vmatprep.subr.mxu0 0.0
        %435 = vmatpush1.msra.mxu0 0.0
        %436 = vmatprep.subr.mxu0 0.0
        %437 = vmatpush1.msra.mxu0 0.0
        %438 = vmatprep.subr.mxu0 0.0
        %439 = vmatpush1.msra.mxu0 0.0
        %440 = vmatprep.subr.mxu0 0.0
        %441 = vmatpush1.msra.mxu0 0.0
        %442 = vmatprep.subr.mxu0 0.0
        %443 = vmatpush1.msra.mxu0 0.0
        %444 = vmatprep.subr.mxu0 0.0
        %445 = vmatpush1.msra.mxu0 0.0
        %446 = vmatprep.subr.mxu0 0.0
        %447 = vmatpush1.msra.mxu0 0.0
        %448 = vmatprep.subr.mxu0 0.0
        %449 = vmatpush1.msra.mxu0 0.0
        %450 = vmatprep.subr.mxu0 0.0
        %451 = vmatpush1.msra.mxu0 0.0
        %452 = vmatprep.subr.mxu0 0.0
        %453 = vmatpush1.msra.mxu0 0.0
        %454 = vmatprep.subr.mxu0 0.0
        %455 = vmatpush1.msra.mxu0 0.0
        %456 = vmatprep.mubr.f32.mxu0 0.0
        %457 = vmatmul.mubr.f32.gmra.mrb[0].mxu0 %v383
        %v458 = vpop.f32.mrb[0].mxu0
        %v459 = vadd.f32 0.0, %v458
        %v460 = vpop.f32.mrb[0].mxu0
        %v461 = vadd.f32 0.0, %v460
        %462 = vmatprep.mubr.f32.mxu0 0.0
        %463 = vmatmul.mubr.f32.gmra.mrb[0].mxu0 %v386
        %v464 = vpop.f32.mrb[0].mxu0
        %v465 = vadd.f32 0.0, %v464
        %v466 = vpop.f32.mrb[0].mxu0
        %v467 = vadd.f32 0.0, %v466
        %468 = vdwg.mxu0
        %v469 = vld [vmem:[#allocation3] sm:$0xff]
        %v470 = vld [vmem:[#allocation3 + $0x8] sm:$0xff]
        %v471 = vld [vmem:[#allocation3 + $0x10] sm:$0xff]
        %v472 = vld [vmem:[#allocation3 + $0x18] sm:$0xff]
        %v473 = vadd.f32 %v469, %v459
        %v474 = vadd.f32 %v470, %v461
        %v475 = vadd.f32 %v471, %v465
        %v476 = vadd.f32 %v472, %v467
        %477 = vst [vmem:[#allocation3] sm:$0xff] %v473
        %478 = vst [vmem:[#allocation3 + $0x8] sm:$0xff] %v474
        %479 = vst [vmem:[#allocation3 + $0x10] sm:$0xff] %v475
        %480 = vst [vmem:[#allocation3 + $0x18] sm:$0xff] %v476
        %v481 = vld [vmem:[#allocation2 + $0x7] sm:$0xff]
        %v482 = vld [vmem:[#allocation2 + $0xf] sm:$0xff]
        %s483 = scalar_lea.vmem %s2, 16
        %v484 = vld [vmem:[%s483] sm:$0xff]
        %v486 = vcombine.high %v484, %v484
        %v488 = vsel %vm260, %v481, 0
        %v491 = vsel %vm260, %v482, 0
        %v493 = vsel %vm286, %v484, 0
        %v495 = vsel %vm286, %v486, 0
        %497 = vmatprep.subr.mxu0 %v495
        %498 = vmatpush1.msra.mxu0 %v493
        %499 = vmatprep.subr.mxu0 0.0
        %500 = vmatpush1.msra.mxu0 0.0
        %501 = vmatprep.subr.mxu0 0.0
        %502 = vmatpush1.msra.mxu0 0.0
        %503 = vmatprep.subr.mxu0 0.0
        %504 = vmatpush1.msra.mxu0 0.0
        %505 = vmatprep.subr.mxu0 0.0
        %506 = vmatpush1.msra.mxu0 0.0
        %507 = vmatprep.subr.mxu0 0.0
        %508 = vmatpush1.msra.mxu0 0.0
        %509 = vmatprep.subr.mxu0 0.0
        %510 = vmatpush1.msra.mxu0 0.0
        %511 = vmatprep.subr.mxu0 0.0
        %512 = vmatpush1.msra.mxu0 0.0
        %513 = vmatprep.subr.mxu0 0.0
        %514 = vmatpush1.msra.mxu0 0.0
        %515 = vmatprep.subr.mxu0 0.0
        %516 = vmatpush1.msra.mxu0 0.0
        %517 = vmatprep.subr.mxu0 0.0
        %518 = vmatpush1.msra.mxu0 0.0
        %519 = vmatprep.subr.mxu0 0.0
        %520 = vmatpush1.msra.mxu0 0.0
        %521 = vmatprep.subr.mxu0 0.0
        %522 = vmatpush1.msra.mxu0 0.0
        %523 = vmatprep.subr.mxu0 0.0
        %524 = vmatpush1.msra.mxu0 0.0
        %525 = vmatprep.subr.mxu0 0.0
        %526 = vmatpush1.msra.mxu0 0.0
        %527 = vmatprep.subr.mxu0 0.0
        %528 = vmatpush1.msra.mxu0 0.0
        %529 = vmatprep.subr.mxu0 0.0
        %530 = vmatpush1.msra.mxu0 0.0
        %531 = vmatprep.subr.mxu0 0.0
        %532 = vmatpush1.msra.mxu0 0.0
        %533 = vmatprep.subr.mxu0 0.0
        %534 = vmatpush1.msra.mxu0 0.0
        %535 = vmatprep.subr.mxu0 0.0
        %536 = vmatpush1.msra.mxu0 0.0
        %537 = vmatprep.subr.mxu0 0.0
        %538 = vmatpush1.msra.mxu0 0.0
        %539 = vmatprep.subr.mxu0 0.0
        %540 = vmatpush1.msra.mxu0 0.0
        %541 = vmatprep.subr.mxu0 0.0
        %542 = vmatpush1.msra.mxu0 0.0
        %543 = vmatprep.subr.mxu0 0.0
        %544 = vmatpush1.msra.mxu0 0.0
        %545 = vmatprep.subr.mxu0 0.0
        %546 = vmatpush1.msra.mxu0 0.0
        %547 = vmatprep.subr.mxu0 0.0
        %548 = vmatpush1.msra.mxu0 0.0
        %549 = vmatprep.subr.mxu0 0.0
        %550 = vmatpush1.msra.mxu0 0.0
        %551 = vmatprep.subr.mxu0 0.0
        %552 = vmatpush1.msra.mxu0 0.0
        %553 = vmatprep.subr.mxu0 0.0
        %554 = vmatpush1.msra.mxu0 0.0
        %555 = vmatprep.subr.mxu0 0.0
        %556 = vmatpush1.msra.mxu0 0.0
        %557 = vmatprep.subr.mxu0 0.0
        %558 = vmatpush1.msra.mxu0 0.0
        %559 = vmatprep.subr.mxu0 0.0
        %560 = vmatpush1.msra.mxu0 0.0
        %561 = vmatprep.mubr.f32.mxu0 0.0
        %562 = vmatmul.mubr.f32.gmra.mrb[0].mxu0 %v488
        %v563 = vpop.f32.mrb[0].mxu0
        %v564 = vadd.f32 0.0, %v563
        %v565 = vpop.f32.mrb[0].mxu0
        %v566 = vadd.f32 0.0, %v565
        %567 = vmatprep.mubr.f32.mxu0 0.0
        %568 = vmatmul.mubr.f32.gmra.mrb[0].mxu0 %v491
        %v569 = vpop.f32.mrb[0].mxu0
        %v570 = vadd.f32 0.0, %v569
        %v571 = vpop.f32.mrb[0].mxu0
        %v572 = vadd.f32 0.0, %v571
        %573 = vdwg.mxu0
        %v574 = vld [vmem:[#allocation3] sm:$0xff]
        %v575 = vld [vmem:[#allocation3 + $0x8] sm:$0xff]
        %v576 = vld [vmem:[#allocation3 + $0x10] sm:$0xff]
        %v577 = vld [vmem:[#allocation3 + $0x18] sm:$0xff]
        %v578 = vadd.f32 %v574, %v564
        %v579 = vadd.f32 %v575, %v566
        %v580 = vadd.f32 %v576, %v570
        %v581 = vadd.f32 %v577, %v572
        %582 = vst [vmem:[#allocation3] sm:$0xff] %v578
        %583 = vst [vmem:[#allocation3 + $0x8] sm:$0xff] %v579
        %584 = vst [vmem:[#allocation3 + $0x10] sm:$0xff] %v580
        %585 = vst [vmem:[#allocation3 + $0x18] sm:$0xff] %v581
        %v586 = vld [vmem:[#allocation3] sm:$0xff]
        %v587 = vld [vmem:[#allocation3 + $0x8] sm:$0xff]
        %v588 = vld [vmem:[#allocation3 + $0x10] sm:$0xff]
        %v589 = vld [vmem:[#allocation3 + $0x18] sm:$0xff]
        %v590 = vxor.u32 %v586, 2147483648
        %v591 = vxor.u32 %v588, 2147483648
        %v592 = vmul.f32 %v590, 1.442695
        %v593 = vpow.pop %v592
        %v594 = vmul.f32 %v591, 1.442695
        %v595 = vpow.pop %v594
        %v596 = vadd.f32 %v593, 1.0
        %v597 = vadd.f32 %v595, 1.0
        %v598 = vrcp.pop %v596
        %v599 = vmul.f32 1.0, %v598
        %v600 = vrcp.pop %v597
        %v601 = vmul.f32 1.0, %v600
        %v602 = vtanh.pop %v587
        %v603 = vtanh.pop %v589
        %v604 = vmul.f32 %v599, %v602
        %v605 = vmul.f32 %v601, %v603
        %606 = vst [vmem:[%s236] sm:$0xff] %v604
        %607 = vst [vmem:[%s236 + $0x8] sm:$0xff] %v605
        %s608 = sand.u32 %s138, 1
        %s609 = scalar_lea.sflag [#allocation5], %s608
        %s610 = sand.u32 %s138, 1
        %s611 = smul.addr %s610, 16
        %s612 = scalar_lea.vmem [#allocation4], %s611
        // Predicated region
        $region37: #{tpu_custom_call.1} parent=35 // pred_check
          %p613 = pneg %p148
        $region38: #{tpu_custom_call.1} parent=35 // pred_check_branch
          %615 = sbr.rel (%p613) target = $region40
        $region39: #{tpu_custom_call.1} parent=35 // pred_region
          %s616 = smul.u32 2, %s23
          %s618 = ssub.s32 256, 256
          %619 = vsyncadd %s609, %s618
          %s620 = smul.addr %s22, 2
          %s621 = sadd.s32 %s616, %s620
          %s622 = smul.addr %s621, 128
          %s623 = scalar_lea.hbm %s4, %s622
          %s624 = sshll.u32 %s612, 4
          %s625 = int_to_ptr.vmem [resolvable:$true] %s624
          %630 = dma.vmem_to_hbm [thread:$0]  %s625, 256, %s623, %s609, 128, 128, 8
        $region40: #{tpu_custom_call.1} parent=35 // pred_fallthru
          _
      $region36: #{tpu_custom_call.1} parent=5 // pred_fallthru
        _
      %p631 = scmp.le.s32.totalorder 2, %s13
      // Predicated region
      $region41: #{tpu_custom_call.1} parent=5 // pred_check
        %p632 = pneg %p631
      $region42: #{tpu_custom_call.1} parent=5 // pred_check_branch
        %634 = sbr.rel (%p632) target = $region44
      $region43: #{tpu_custom_call.1} parent=5 // pred_region
        %s635 = ssub.s32 %s13, 2
        // Predicated region
        $region45: #{tpu_custom_call.1} parent=43 // pred_check
          %p636 = pneg %p154
        $region46: #{tpu_custom_call.1} parent=43 // pred_check_branch
          %638 = sbr.rel (%p636) target = $region48
        $region47: #{tpu_custom_call.1} parent=43 // pred_region
          %s639 = sand.u32 %s139, 1
          %s640 = scalar_lea.sflag [#allocation5], %s639
          %s641 = sand.u32 %s139, 1
          %s642 = smul.addr %s641, 16
          %s643 = scalar_lea.vmem [#allocation4], %s642
          %644 = dma.done %s640, 256
        $region48: #{tpu_custom_call.1} parent=43 // pred_fallthru
          _
      $region44: #{tpu_custom_call.1} parent=5 // pred_fallthru
        _
    $region6: #{tpu_custom_call.1} parent=1 // loop_footer
      %s17 = sadd.s32 1, %s13
    $region7: #{tpu_custom_call.1} parent=1 // loop_footer_branch
      %12 = sbr.rel target = $region3
    $region8: #{tpu_custom_call.1} parent=1 // loop_exit
      _
    %645 = vsyncpa [#allocation5], 1
    %s646 = scalar_lea.sflag [#allocation5], 1
    %647 = vsyncpa %s646, 1

</llo_original>
